<compile_context>
chip_gen: v7x
topology: tpu7x:2x2x1
jax: 0.10.0
libtpu: 0.0.40
codegen_flags: <defaults>
</compile_context>

<pallas_src>
import math

import jax
import jax.numpy as jnp
from jax.experimental import pallas as pl
from jax.experimental.pallas import tpu as pltpu

_EPS = 1e-12                      # matches torch.nn.functional.normalize default eps
_VMEM_LIMIT = 32 * 1024 * 1024    # scoped VMEM limit safe on v5e/v6e/v7x
_BLOCK_BUDGET = 8 * 1024 * 1024   # per-step working-set budget for Bb selection


# ----------------------------------------------------------------------------
# Kernel 1: bipartite soft-matching node stats.
#   - in-VMEM even/odd deinterleave (strided sublane loads from the x block)
#   - raw scores = a @ b^T on the MXU (f32 accumulation, never stored to HBM)
#   - post-scaling by 1/||b|| (columns) then 1/||a|| (rows) instead of
#     pre-normalizing the operands
#   - node_max / first-occurrence node_idx over the last axis
# ----------------------------------------------------------------------------
def _tome_scores_kernel(x_ref, nmax_ref, nidx_ref):
    T = x_ref.shape[1]
    t1, t2 = (T + 1) // 2, T // 2

    # Fused deinterleave: sublane-strided loads straight from the (Bb, T, C)
    # VMEM block (no wrapper-side a_tok/b_tok HBM round trip).
    a = x_ref[:, pl.ds(0, t1, stride=2), :]          # (Bb, t1, C) even tokens
    b = x_ref[:, pl.ds(1, t2, stride=2), :]          # (Bb, t2, C) odd tokens

    # F.normalize(p=2): x / max(||x||, eps)  ==  x * rsqrt(max(||x||^2, eps^2)).
    # Post-scaling:  s_norm[i,j] = (a[i].b[j]) * inv_a[i] * inv_b[j]; argmax_j is
    # invariant to the positive per-row factor inv_a[i].
    a32 = a.astype(jnp.float32)
    b32 = b.astype(jnp.float32)
    inv_a = jax.lax.rsqrt(
        jnp.maximum(jnp.sum(a32 * a32, axis=-1), _EPS * _EPS))       # (Bb, t1)
    inv_b = jax.lax.rsqrt(
        jnp.maximum(jnp.sum(b32 * b32, axis=-1), _EPS * _EPS))       # (Bb, t2)

    # MXU matmul on the raw model-dtype operands, f32 accumulation.
    # TODO(synk): on v5e, casting f32 operands to bf16 here (ranking only needs
    # relative order) would keep the kernel purely DMA-bound.
    s_raw = jnp.einsum('btc,bsc->bts', a, b,
                       preferred_element_type=jnp.float32)           # (Bb, t1, t2)
    s = s_raw * inv_b[:, None, :]            # column-scaled scores, stays in VMEM

    s_max = jnp.max(s, axis=-1)                                      # (Bb, t1)
    nmax_ref[...] = s_max * inv_a            # fully-normalized node_max

    # First-occurrence argmax (torch.max tie-break) from the SAME column-scaled
    # tensor used for the max, so ties resolve identically.
    lane_idx = jax.lax.broadcasted_iota(jnp.int32, s.shape, 2)
    is_max = s == s_max[..., None]
    nidx_ref[...] = jnp.min(jnp.where(is_max, lane_idx, jnp.int32(t2)), axis=-1)


def _pick_batch_block(B, T, C, itemsize):
    """Largest divisor of B (<= 8) whose per-step working set fits the budget."""
    t1, t2 = (T + 1) // 2, T // 2
    best = 1
    for bb in range(1, min(B, 8) + 1):
        if B % bb:
            continue
        need = bb * (2 * T * C * itemsize       # double-buffered (Bb, T, C) input
                     + 8 * t1 * t2              # f32 scaled scores + argmax temps
                     + 16 * (t1 + t2))          # norm / index vectors (slack)
        if need <= _BLOCK_BUDGET:
            best = bb
    return best


def tome_scores(x):
    B, T, C = x.shape
    t1, t2 = (T + 1) // 2, T // 2
    itemsize = jnp.dtype(x.dtype).itemsize
    Bb = _pick_batch_block(B, T, C, itemsize)
    cost = pl.CostEstimate(
        flops=2 * B * t1 * t2 * C + 4 * B * (t1 + t2) * C + 3 * B * t1 * t2,
        transcendentals=B * (t1 + t2),
        bytes_accessed=B * T * C * itemsize + 2 * B * t1 * 4,
    )
    # TODO(synk): for very long sequences (T >= 4k) add a t2 grid axis with
    # running max/argmax scratch (flash-attention style) to bound the (t1, t2)
    # f32 scores block on v7x's 64 MiB VMEM; for tiny B on v7x a second
    # 'parallel' t1 row-tile axis would feed both TensorCores.
    # TODO(synk): node_max/node_idx last dim (t1) is generally not a multiple of
    # 128 -> masked stores; they are ~1 KB/step vs ~MBs of input DMA, so left
    # unpadded.
    return pl.pallas_call(
        _tome_scores_kernel,
        grid=(B // Bb,),
        in_specs=[pl.BlockSpec((Bb, T, C), lambda i: (i, 0, 0))],
        out_specs=(pl.BlockSpec((Bb, t1), lambda i: (i, 0)),
                   pl.BlockSpec((Bb, t1), lambda i: (i, 0))),
        out_shape=(jax.ShapeDtypeStruct((B, t1), jnp.float32),
                   jax.ShapeDtypeStruct((B, t1), jnp.int32)),
        compiler_params=pltpu.CompilerParams(
            dimension_semantics=("parallel",),
            vmem_limit_bytes=_VMEM_LIMIT),
        cost_estimate=cost,
    )(x)


# ----------------------------------------------------------------------------
# Kernel 2: weighted-average finalize of merge_wavg:  x_merged / size_merged.
# Flattened to (B*Tm, C) and tiled over rows; exact reciprocal of the tiny
# (rows, 1) size column + broadcast multiply (in the model dtype for bf16).
# ----------------------------------------------------------------------------
def _wavg_div_kernel(x_ref, size_ref, o_ref):
    inv = 1.0 / size_ref[...].astype(jnp.float32)      # (rows, 1) exact reciprocal
    x = x_ref[...]
    if o_ref.dtype == jnp.float32:
        o_ref[...] = x.astype(jnp.float32) * inv
    else:
        # bf16/f16 models: broadcast multiply in the model dtype (v6e/v7x have
        # bf16 VALU; v5e's compiler decomposes it).  Only the (rows, 1)
        # reciprocal is kept in f32.
        o_ref[...] = (x * inv.astype(x_ref.dtype)).astype(o_ref.dtype)


def _pick_row_tile(N):
    for cand in (1024, 512, 256, 128, 64, 32, 16, 8):
        if cand <= N:
            return cand
    return N  # N < 8: single full-extent block


def wavg_divide(x_merged, size_merged):
    B, Tm, C = x_merged.shape
    N = B * Tm
    x_flat = x_merged.reshape(N, C)         # row-major compatible => free reshape
    s_flat = size_merged.reshape(N, 1)
    rows = _pick_row_tile(N)
    itemsize = jnp.dtype(x_merged.dtype).itemsize
    cost = pl.CostEstimate(
        flops=N * C,
        transcendentals=N,
        bytes_accessed=2 * N * C * itemsize + N * itemsize,
    )
    out = pl.pallas_call(
        _wavg_div_kernel,
        grid=(pl.cdiv(N, rows),),
        in_specs=[pl.BlockSpec((rows, C), lambda i: (i, 0)),
                  pl.BlockSpec((rows, 1), lambda i: (i, 0))],
        out_specs=pl.BlockSpec((rows, C), lambda i: (i, 0)),
        out_shape=jax.ShapeDtypeStruct((N, C), x_merged.dtype),
        compiler_params=pltpu.CompilerParams(
            dimension_semantics=("parallel",),
            vmem_limit_bytes=_VMEM_LIMIT),
        cost_estimate=cost,
    )(x_flat, s_flat)
    return out.reshape(B, Tm, C)


# ----------------------------------------------------------------------------
# CompressedModel (JAX / Pallas version)
# ----------------------------------------------------------------------------
class CompressedModelPallas:
    def __init__(self, compress_method='ToMe', r=0.95, k=2, use_k=False):
        self.r = r
        self.k = k
        self.use_k = use_k
        self.compress_method = compress_method
        # nn.Parameter(torch.tensor(0.01)) — unused in the compress path,
        # kept for parity with the reference module.
        self.temp = jnp.float32(0.01)

    def do_nothing(self, x, mode=None):
        return x

    def _num_merged(self, T):
        if self.use_k:
            if self.k == 0:
                return 0
            return min(self.k, T // 2)
        if self.r == 1.0:
            return 0
        return math.floor(T - T * self.r)

    def bipartite_soft_matching(self, x):
        _, T, _ = x.shape
        r = self._num_merged(T)
        if r == 0:
            return self.do_nothing

        # Scores kernel consumes x directly (deinterleave fused in-kernel).
        node_max, node_idx = tome_scores(x)

        # TODO(synk): data-dependent argsort / gather / scatter index
        # bookkeeping stays in plain JAX (no clean Pallas TPU dynamic sort).
        order = jnp.argsort(-node_max, axis=-1)                    # descending
        unm_idx = order[:, r:]                                     # (B, t1-r)
        src_idx = order[:, :r]                                     # (B, r)
        dst_idx = jnp.take_along_axis(node_idx, src_idx, axis=1)   # (B, r)

        def merge(v, mode='mean'):
            src_half = v[:, 0::2, :]                               # (B, t1, C)
            dst_half = v[:, 1::2, :]                               # (B, t2, C)
            unm = jnp.take_along_axis(src_half, unm_idx[..., None], axis=1)
            src = jnp.take_along_axis(src_half, src_idx[..., None], axis=1)
            if mode == 'sum':     # scatter_reduce(reduce='sum', include_self=True)
                dst = jax.vmap(lambda d, i, s: d.at[i].add(s))(dst_half, dst_idx, src)
            elif mode == 'amax':  # scatter_reduce(reduce='amax', include_self=True)
                dst = jax.vmap(lambda d, i, s: d.at[i].max(s))(dst_half, dst_idx, src)
            else:
                raise NotImplementedError(f"merge mode '{mode}' not implemented")
            return jnp.concatenate([unm, dst], axis=1)

        return merge

    def merge_wavg(self, merge, x, size=None):
        if merge is self.do_nothing:
            return x
        if size is None:
            size = jnp.ones_like(x[..., :1])
        x_merged = merge(x * size, mode='sum')
        size_merged = merge(size, mode='sum')
        return wavg_divide(x_merged, size_merged)

    def merge_source(self, merge, x, source=None):
        if source is None:
            n, t, _ = x.shape
            source = jnp.broadcast_to(jnp.eye(t, dtype=x.dtype)[None], (n, t, t))
        return merge(source, mode='amax')

    def compress_hidden_state(self, x, return_source=False, margin=0.5, source=None):
        if self.compress_method == 'dct':
            # TODO(synk): 'dct' branch needs external torch_dct.dct/idct which is
            # not defined in the reference file.
            raise NotImplementedError("dct branch requires torch_dct (undefined in reference)")
        elif self.compress_method in ('ToMe', 'PiToMe'):
            # TODO(synk): PiToMe with margin < 0.45 (isolation-score path) is not
            # ported; with the default margin >= 0.45 it reduces exactly to ToMe.
            merge = self.bipartite_soft_matching(x)
            x_reconstructed = self.merge_wavg(merge, x)
        else:
            return (x, x)
        if return_source:
            source = self.merge_source(merge, x, source)
        return (x_reconstructed, source)

    def forward(self, input_ids=None, pixel_values=None, attention_mask=None):
        # Matches the reference: both branches raise NotImplementedError there too.
        raise NotImplementedError(
            'get_text_features / get_vision_features are not implemented in the '
            'reference module; use compress_hidden_state for the compute path.')


# ----------------------------------------------------------------------------
# Pure-JAX reference of the ToMe + merge_wavg path (for correctness check)
# ----------------------------------------------------------------------------
def _reference_tome_wavg(x, r):
    xn = x / jnp.maximum(jnp.linalg.norm(x, axis=-1, keepdims=True), _EPS)
    a, b = xn[:, 0::2, :], xn[:, 1::2, :]
    scores = jnp.einsum('btc,bsc->bts', a, b)
    node_max = scores.max(-1)
    node_idx = scores.argmax(-1)
    order = jnp.argsort(-node_max, axis=-1)
    unm_idx, src_idx = order[:, r:], order[:, :r]
    dst_idx = jnp.take_along_axis(node_idx, src_idx, axis=1)

    def merge(v):
        sh, dh = v[:, 0::2, :], v[:, 1::2, :]
        unm = jnp.take_along_axis(sh, unm_idx[..., None], axis=1)
        src = jnp.take_along_axis(sh, src_idx[..., None], axis=1)
        dst = jax.vmap(lambda d, i, s: d.at[i].add(s))(dh, dst_idx, src)
        return jnp.concatenate([unm, dst], axis=1)

    size = jnp.ones_like(x[..., :1])
    return merge(x * size) / merge(size)


if __name__ == "__main__":
    B, T, C = 2, 8, 32
    key = jax.random.PRNGKey(0)
    x = jax.random.normal(key, (B, T, C), dtype=jnp.float32)

    # r=0.75 -> merge r = floor(T - T*r) = 2 tokens; output has T - 2 = 6 tokens.
    model = CompressedModelPallas(compress_method='ToMe', r=0.75, k=2, use_k=False)

    # f32 path: compare against the pure-JAX reference.
    x_rec, _ = model.compress_hidden_state(x)
    x_rec = jax.block_until_ready(x_rec)

    expected = _reference_tome_wavg(x, model._num_merged(T))
    assert x_rec.shape == (B, T - 2, C), x_rec.shape
    assert jnp.allclose(x_rec, expected, atol=1e-5, rtol=1e-5), "mismatch vs reference"

    # bf16 smoke test (exercises bf16 MXU operands + bf16 wavg path); argmax on
    # near-ties may legitimately differ from f32, so only shape/finiteness checks.
    x_bf16 = x.astype(jnp.bfloat16)
    x_rec_bf16, _ = model.compress_hidden_state(x_bf16)
    x_rec_bf16 = jax.block_until_ready(x_rec_bf16)
    assert x_rec_bf16.shape == (B, T - 2, C), x_rec_bf16.shape
    assert bool(jnp.all(jnp.isfinite(x_rec_bf16.astype(jnp.float32)))), "non-finite bf16 output"

    print("KERNEL_OK")
</pallas_src>

<mosaic_0001>
module attributes {stable_mosaic.version = 11 : i64} {
  func.func @_tome_scores_kernel(%arg0: i32, %arg1: memref<2x8x32xf32, #tpu.memory_space<vmem>>, %arg2: memref<2x4xf32, #tpu.memory_space<vmem>>, %arg3: memref<2x4xi32, #tpu.memory_space<vmem>>) attributes {dimension_semantics = [#tpu.dimension_semantics<parallel>], iteration_bounds = array<i64: 1>, scalar_prefetch = 0 : i64, scratch_operands = 0 : i64, tpu.core_type = #tpu.core_type<tc>, window_params = [{transform_indices = @transform_0, window_bounds = array<i64: 2, 8, 32>}, {transform_indices = @transform_1, window_bounds = array<i64: 2, 4>}, {transform_indices = @transform_2, window_bounds = array<i64: 2, 4>}]} {
    %c0 = arith.constant 0 : index
    %c0_0 = arith.constant 0 : index
    %c0_1 = arith.constant 0 : index
    %0 = tpu.strided_load %arg1[%c0, %c0_0, %c0_1] {strides = array<i32: 1, 2, 1>} : memref<2x8x32xf32, #tpu.memory_space<vmem>>, vector<2x4x32xf32>
    %c0_2 = arith.constant 0 : index
    %c1 = arith.constant 1 : index
    %c0_3 = arith.constant 0 : index
    %1 = tpu.strided_load %arg1[%c0_2, %c1, %c0_3] {strides = array<i32: 1, 2, 1>} : memref<2x8x32xf32, #tpu.memory_space<vmem>>, vector<2x4x32xf32>
    %2 = arith.mulf %0, %0 : vector<2x4x32xf32>
    %cst = arith.constant dense<0.000000e+00> : vector<2x4xf32>
    %3 = vector.multi_reduction <add>, %2, %cst [2] : vector<2x4x32xf32> to vector<2x4xf32>
    %cst_4 = arith.constant 1.000000e-24 : f32
    %4 = vector.broadcast %cst_4 : f32 to vector<2x4xf32>
    %5 = arith.maximumf %3, %4 : vector<2x4xf32>
    %6 = math.rsqrt %5 : vector<2x4xf32>
    %7 = arith.mulf %1, %1 : vector<2x4x32xf32>
    %cst_5 = arith.constant dense<0.000000e+00> : vector<2x4xf32>
    %8 = vector.multi_reduction <add>, %7, %cst_5 [2] : vector<2x4x32xf32> to vector<2x4xf32>
    %cst_6 = arith.constant 1.000000e-24 : f32
    %9 = vector.broadcast %cst_6 : f32 to vector<2x4xf32>
    %10 = arith.maximumf %8, %9 : vector<2x4xf32>
    %11 = math.rsqrt %10 : vector<2x4xf32>
    "tpu.trace_start"() <{level = 10 : i32, message = "btc,bsc->bts"}> : () -> ()
    %cst_7 = arith.constant dense<0.000000e+00> : vector<2x4x4xf32>
    %12 = tpu.matmul %0, %1, %cst_7 {dimension_numbers = #tpu.dot_dimension_numbers<[2], [2], [1], [1], [0, 0, 0, 1, 1, 1], [0], [0]>} : vector<2x4x32xf32>, vector<2x4x32xf32>, vector<2x4x4xf32> -> vector<2x4x4xf32>
    "tpu.trace_stop"() : () -> ()
    %13 = vector.shape_cast %11 : vector<2x4xf32> to vector<2x1x4xf32>
    %14 = vector.broadcast %13 : vector<2x1x4xf32> to vector<2x4x4xf32>
    %15 = arith.mulf %12, %14 : vector<2x4x4xf32>
    %cst_8 = arith.constant dense<0xFF800000> : vector<2x4xf32>
    %16 = vector.multi_reduction <maximumf>, %15, %cst_8 [2] : vector<2x4x4xf32> to vector<2x4xf32>
    %17 = arith.mulf %16, %6 : vector<2x4xf32>
    %c0_9 = arith.constant 0 : index
    %c0_10 = arith.constant 0 : index
    %18 = vector.load %arg2[%c0_9, %c0_10] : memref<2x4xf32, #tpu.memory_space<vmem>>, vector<2x4xf32>
    tpu.vector_store %arg2[%c0_9, %c0_10], %17 {strides = array<i32>} : memref<2x4xf32, #tpu.memory_space<vmem>>, vector<2x4xf32>,
    %19 = tpu.iota {dimensions = array<i32: 2>} : vector<2x4x4xi32>
    %20 = vector.shape_cast %16 : vector<2x4xf32> to vector<2x4x1xf32>
    %21 = vector.broadcast %20 : vector<2x4x1xf32> to vector<2x4x4xf32>
    %22 = arith.cmpf oeq, %15, %21 : vector<2x4x4xf32>
    %c4_i32 = arith.constant 4 : i32
    %23 = vector.broadcast %c4_i32 : i32 to vector<2x4x4xi32>
    %24 = arith.select %22, %19, %23 : vector<2x4x4xi1>, vector<2x4x4xi32>
    %cst_11 = arith.constant dense<2147483647> : vector<2x4xi32>
    %25 = vector.multi_reduction <minsi>, %24, %cst_11 [2] : vector<2x4x4xi32> to vector<2x4xi32>
    %c0_12 = arith.constant 0 : index
    %c0_13 = arith.constant 0 : index
    %26 = vector.load %arg3[%c0_12, %c0_13] : memref<2x4xi32, #tpu.memory_space<vmem>>, vector<2x4xi32>
    tpu.vector_store %arg3[%c0_12, %c0_13], %25 {strides = array<i32>} : memref<2x4xi32, #tpu.memory_space<vmem>>, vector<2x4xi32>,
    return
  }
  func.func @transform_0(%arg0: i32) -> (i32, i32, i32) {
    %c0_i32 = arith.constant 0 : i32
    %c0_i32_0 = arith.constant 0 : i32
    %c0_i32_1 = arith.constant 0 : i32
    return %arg0, %c0_i32, %c0_i32_0 : i32, i32, i32
  }
  func.func @transform_1(%arg0: i32) -> (i32, i32) {
    %c0_i32 = arith.constant 0 : i32
    %c0_i32_0 = arith.constant 0 : i32
    return %arg0, %c0_i32 : i32, i32
  }
  func.func @transform_2(%arg0: i32) -> (i32, i32) {
    %c0_i32 = arith.constant 0 : i32
    %c0_i32_0 = arith.constant 0 : i32
    return %arg0, %c0_i32 : i32, i32
  }
}

</mosaic_0001>

<llo_original>
// kernel: tpu_custom_call.1
$region0: #{tpu_custom_call.1}
  #allocation0 [shape = 'u32[]', space=smem, size = 0x4, offset = 0x4, fixed_abs, tag = 'smem constant byte address 0x4 - core index']
  #allocation1 [shape = 'u32[144,128]{1,0:T(1,128)}', space=vmem, size = 0x12000, scoped, tag = 'internal scratch']
  %s0 = inlined_call_operand.hbm [shape: f32[2,8,32], index: 0, kind: input, shape index: {}]
  %s1 = inlined_call_operand.hbm [shape: f32[2,4], index: 1, kind: output, shape index: {0}]
  %s2 = inlined_call_operand.hbm [shape: s32[2,4], index: 2, kind: output, shape index: {1}]
  %3 = xla_tuple %s1, %s2
  %s4 = sld [smem:[#allocation0]]
  $region26: #{tpu_custom_call.1} parent=0
    _
  %s6 = ssub.s32 1, %s4
  %s7 = scalar_select 0, %s6, %s4
  $region1: #{tpu_custom_call.1} parent=0
    #allocation2 [shape = 'u8[8192]{0}', space=vmem, size = 0x2000, scoped, tag = 'input window, operand 0, single buffered']
    #allocation3 [shape = 's32[1]{0}', space=sflag, size = 0x4, scoped, tag = 'scoped memory for tpu_custom_call.1']
    #allocation4 [shape = 's32[1]{0}', space=sflag, size = 0x4, scoped, tag = 'scoped memory for tpu_custom_call.1']
    #allocation5 [shape = 'u8[1024]{0}', space=vmem, size = 0x400, scoped, tag = 'output window, operand 0, single buffered']
    #allocation6 [shape = 'u8[1024]{0}', space=vmem, size = 0x400, scoped, tag = 'output window, operand 1, single buffered']
    #allocation7 [shape = 's32[1]{0}', space=sflag, size = 0x4, scoped, tag = 'scoped memory for tpu_custom_call.1']
    %8 = vsyncpa [#allocation3], 0
    %9 = vsyncpa [#allocation4], 0
    %10 = vsyncpa [#allocation7], 0
    // Predicated region
    $region2: #{tpu_custom_call.1} parent=1 // pred_check
      _
    $region3: #{tpu_custom_call.1} parent=1 // pred_check_branch
      %12 = sbr.rel (0) target = $region5
    $region4: #{tpu_custom_call.1} parent=1 // pred_region
      %s14 = ssub.s32 256, 256
      %15 = vsyncadd [#allocation3], %s14
      %s16 = sshll.u32 [#allocation2], 4
      %s17 = int_to_ptr.vmem [resolvable:$true] %s16
      %22 = dma.hbm_to_vmem [thread:$0]  %s0, 256, %s17, [#allocation3], 128, 128, 8
    $region5: #{tpu_custom_call.1} parent=1 // pred_fallthru
      _
    // Predicated region
    $region6: #{tpu_custom_call.1} parent=1 // pred_check
      _
    $region7: #{tpu_custom_call.1} parent=1 // pred_check_branch
      %24 = sbr.rel (0) target = $region9
    $region8: #{tpu_custom_call.1} parent=1 // pred_region
      %25 = dma.done [#allocation3], 256
    $region9: #{tpu_custom_call.1} parent=1 // pred_fallthru
      _
    %v26 = vld [vmem:[#allocation2] ss:$2 sm:$0xf]
    %s27 = scalar_lea.vmem [#allocation2], 8
    %v28 = vld [vmem:[%s27] ss:$2 sm:$0xf]
    %s29 = scalar_lea.vmem [#allocation2], 1
    %v30 = vld [vmem:[%s29] ss:$2 sm:$0xf]
    %s31 = scalar_lea.vmem [#allocation2], 9
    %v32 = vld [vmem:[%s31] ss:$2 sm:$0xf]
    %v33 = vmul.f32 %v26, %v26
    %v34 = vmul.f32 %v28, %v28
    %vm35 = vcmask 257024
    %v36 = vsel %vm35, %v33, 0.0
    %37 = vadd.xlane.f32.xlu0 %v36
    %v38 = vpop.xlane.xlu0 %37
    %v39 = vsel %vm35, %v34, 0.0
    %40 = vadd.xlane.f32.xlu0 %v39
    %v41 = vpop.xlane.xlu0 %40
    %v42 = vmax.f32 %v38, 1e-24
    %v43 = vmax.f32 %v41, 1e-24
    %v44 = vrsqrt.pop %v42
    %v45 = vrsqrt.pop %v43
    %v46 = vmul.f32 %v30, %v30
    %v47 = vmul.f32 %v32, %v32
    %v48 = vsel %vm35, %v46, 0.0
    %49 = vadd.xlane.f32.xlu0 %v48
    %v50 = vpop.xlane.xlu0 %49
    %v51 = vsel %vm35, %v47, 0.0
    %52 = vadd.xlane.f32.xlu0 %v51
    %v53 = vpop.xlane.xlu0 %52
    %v54 = vmax.f32 %v50, 1e-24
    %v55 = vmax.f32 %v53, 1e-24
    %v56 = vrsqrt.pop %v54
    %v57 = vrsqrt.pop %v55
    %vm58 = vcmask 261120
    %v60 = vsel %vm58, %v26, 0
    %v63 = vsel %vm58, %v30, 0
    %65 = vmatprep.subr.mxu0 0.0
    %66 = vmatpush1.xpose.msra.mxu0 %v63
    %67 = vmatprep.subr.mxu0 0.0
    %68 = vmatpush1.xpose.msra.mxu0 0.0
    %69 = vmatprep.subr.mxu0 0.0
    %70 = vmatpush1.xpose.msra.mxu0 0.0
    %71 = vmatprep.subr.mxu0 0.0
    %72 = vmatpush1.xpose.msra.mxu0 0.0
    %73 = vmatprep.subr.mxu0 0.0
    %74 = vmatpush1.xpose.msra.mxu0 0.0
    %75 = vmatprep.subr.mxu0 0.0
    %76 = vmatpush1.xpose.msra.mxu0 0.0
    %77 = vmatprep.subr.mxu0 0.0
    %78 = vmatpush1.xpose.msra.mxu0 0.0
    %79 = vmatprep.subr.mxu0 0.0
    %80 = vmatpush1.xpose.msra.mxu0 0.0
    %81 = vmatprep.subr.mxu0 0.0
    %82 = vmatpush1.xpose.msra.mxu0 0.0
    %83 = vmatprep.subr.mxu0 0.0
    %84 = vmatpush1.xpose.msra.mxu0 0.0
    %85 = vmatprep.subr.mxu0 0.0
    %86 = vmatpush1.xpose.msra.mxu0 0.0
    %87 = vmatprep.subr.mxu0 0.0
    %88 = vmatpush1.xpose.msra.mxu0 0.0
    %89 = vmatprep.subr.mxu0 0.0
    %90 = vmatpush1.xpose.msra.mxu0 0.0
    %91 = vmatprep.subr.mxu0 0.0
    %92 = vmatpush1.xpose.msra.mxu0 0.0
    %93 = vmatprep.subr.mxu0 0.0
    %94 = vmatpush1.xpose.msra.mxu0 0.0
    %95 = vmatprep.subr.mxu0 0.0
    %96 = vmatpush1.xpose.msra.mxu0 0.0
    %97 = vmatprep.subr.mxu0 0.0
    %98 = vmatpush1.xpose.msra.mxu0 0.0
    %99 = vmatprep.subr.mxu0 0.0
    %100 = vmatpush1.xpose.msra.mxu0 0.0
    %101 = vmatprep.subr.mxu0 0.0
    %102 = vmatpush1.xpose.msra.mxu0 0.0
    %103 = vmatprep.subr.mxu0 0.0
    %104 = vmatpush1.xpose.msra.mxu0 0.0
    %105 = vmatprep.subr.mxu0 0.0
    %106 = vmatpush1.xpose.msra.mxu0 0.0
    %107 = vmatprep.subr.mxu0 0.0
    %108 = vmatpush1.xpose.msra.mxu0 0.0
    %109 = vmatprep.subr.mxu0 0.0
    %110 = vmatpush1.xpose.msra.mxu0 0.0
    %111 = vmatprep.subr.mxu0 0.0
    %112 = vmatpush1.xpose.msra.mxu0 0.0
    %113 = vmatprep.subr.mxu0 0.0
    %114 = vmatpush1.xpose.msra.mxu0 0.0
    %115 = vmatprep.subr.mxu0 0.0
    %116 = vmatpush1.xpose.msra.mxu0 0.0
    %117 = vmatprep.subr.mxu0 0.0
    %118 = vmatpush1.xpose.msra.mxu0 0.0
    %119 = vmatprep.subr.mxu0 0.0
    %120 = vmatpush1.xpose.msra.mxu0 0.0
    %121 = vmatprep.subr.mxu0 0.0
    %122 = vmatpush1.xpose.msra.mxu0 0.0
    %123 = vmatprep.subr.mxu0 0.0
    %124 = vmatpush1.xpose.msra.mxu0 0.0
    %125 = vmatprep.subr.mxu0 0.0
    %126 = vmatpush1.xpose.msra.mxu0 0.0
    %127 = vmatprep.subr.mxu0 0.0
    %128 = vmatpush1.xpose.msra.mxu0 0.0
    %129 = vmatprep.mubr.f32.mxu0 0.0
    %130 = vmatmul.mubr.f32.gmra.mrb[0].mxu0 %v60
    %v131 = vpop.f32.mrb[0].mxu0
    %v132 = vadd.f32 0.0, %v131
    %v133 = vpop.f32.mrb[0].mxu0
    %134 = vdwg.mxu0
    %v136 = vsel %vm58, %v28, 0
    %v139 = vsel %vm58, %v32, 0
    %141 = vmatprep.subr.mxu0 0.0
    %142 = vmatpush1.xpose.msra.mxu0 %v139
    %143 = vmatprep.subr.mxu0 0.0
    %144 = vmatpush1.xpose.msra.mxu0 0.0
    %145 = vmatprep.subr.mxu0 0.0
    %146 = vmatpush1.xpose.msra.mxu0 0.0
    %147 = vmatprep.subr.mxu0 0.0
    %148 = vmatpush1.xpose.msra.mxu0 0.0
    %149 = vmatprep.subr.mxu0 0.0
    %150 = vmatpush1.xpose.msra.mxu0 0.0
    %151 = vmatprep.subr.mxu0 0.0
    %152 = vmatpush1.xpose.msra.mxu0 0.0
    %153 = vmatprep.subr.mxu0 0.0
    %154 = vmatpush1.xpose.msra.mxu0 0.0
    %155 = vmatprep.subr.mxu0 0.0
    %156 = vmatpush1.xpose.msra.mxu0 0.0
    %157 = vmatprep.subr.mxu0 0.0
    %158 = vmatpush1.xpose.msra.mxu0 0.0
    %159 = vmatprep.subr.mxu0 0.0
    %160 = vmatpush1.xpose.msra.mxu0 0.0
    %161 = vmatprep.subr.mxu0 0.0
    %162 = vmatpush1.xpose.msra.mxu0 0.0
    %163 = vmatprep.subr.mxu0 0.0
    %164 = vmatpush1.xpose.msra.mxu0 0.0
    %165 = vmatprep.subr.mxu0 0.0
    %166 = vmatpush1.xpose.msra.mxu0 0.0
    %167 = vmatprep.subr.mxu0 0.0
    %168 = vmatpush1.xpose.msra.mxu0 0.0
    %169 = vmatprep.subr.mxu0 0.0
    %170 = vmatpush1.xpose.msra.mxu0 0.0
    %171 = vmatprep.subr.mxu0 0.0
    %172 = vmatpush1.xpose.msra.mxu0 0.0
    %173 = vmatprep.subr.mxu0 0.0
    %174 = vmatpush1.xpose.msra.mxu0 0.0
    %175 = vmatprep.subr.mxu0 0.0
    %176 = vmatpush1.xpose.msra.mxu0 0.0
    %177 = vmatprep.subr.mxu0 0.0
    %178 = vmatpush1.xpose.msra.mxu0 0.0
    %179 = vmatprep.subr.mxu0 0.0
    %180 = vmatpush1.xpose.msra.mxu0 0.0
    %181 = vmatprep.subr.mxu0 0.0
    %182 = vmatpush1.xpose.msra.mxu0 0.0
    %183 = vmatprep.subr.mxu0 0.0
    %184 = vmatpush1.xpose.msra.mxu0 0.0
    %185 = vmatprep.subr.mxu0 0.0
    %186 = vmatpush1.xpose.msra.mxu0 0.0
    %187 = vmatprep.subr.mxu0 0.0
    %188 = vmatpush1.xpose.msra.mxu0 0.0
    %189 = vmatprep.subr.mxu0 0.0
    %190 = vmatpush1.xpose.msra.mxu0 0.0
    %191 = vmatprep.subr.mxu0 0.0
    %192 = vmatpush1.xpose.msra.mxu0 0.0
    %193 = vmatprep.subr.mxu0 0.0
    %194 = vmatpush1.xpose.msra.mxu0 0.0
    %195 = vmatprep.subr.mxu0 0.0
    %196 = vmatpush1.xpose.msra.mxu0 0.0
    %197 = vmatprep.subr.mxu0 0.0
    %198 = vmatpush1.xpose.msra.mxu0 0.0
    %199 = vmatprep.subr.mxu0 0.0
    %200 = vmatpush1.xpose.msra.mxu0 0.0
    %201 = vmatprep.subr.mxu0 0.0
    %202 = vmatpush1.xpose.msra.mxu0 0.0
    %203 = vmatprep.subr.mxu0 0.0
    %204 = vmatpush1.xpose.msra.mxu0 0.0
    %205 = vmatprep.mubr.f32.mxu0 0.0
    %206 = vmatmul.mubr.f32.gmra.mrb[0].mxu0 %v136
    %v207 = vpop.f32.mrb[0].mxu0
    %v208 = vadd.f32 0.0, %v207
    %v209 = vpop.f32.mrb[0].mxu0
    %210 = vdwg.mxu0
    %v213 = vlaneseq
    %v214 = vand.u32 %v213, 127
    %v215 = vlaneseq
    %v216 = vshrl.u32 %v215, 7
    %v217 = vsub.s32 %v214, %v216
    %v218 = vrot.slane %v56, %v217
    %v219 = vlaneseq
    %v220 = vshrl.u32 %v219, 7
    %v221 = vsub.s32 %v214, %v220
    %v222 = vrot.slane %v57, %v221
    %vm223 = vcmask 1041409
    %vm224 = vcmask 1042434
    %v225 = vsel %vm224, %v218, %v218
    %vm226 = vcmask 1043459
    %v227 = vsel %vm226, %v218, %v225
    %v228 = vsel %vm224, %v222, %v222
    %v229 = vsel %vm226, %v222, %v228
    %v232 = vmul.f32 %v132, %v227
    %v233 = vmul.f32 %v208, %v229
    %vm234 = vcmask 27648
    %v235 = vsel %vm234, %v232, -inf
    %236 = vmax.xlane.f32.xlu0 %v235
    %v237 = vpop.xlane.xlu0 %236
    %v238 = vsel %vm234, %v233, -inf
    %239 = vmax.xlane.f32.xlu0 %v238
    %v240 = vpop.xlane.xlu0 %239
    %v241 = vmul.f32 %v237, %v44
    %v242 = vmul.f32 %v240, %v45
    %v245 = vlaneseq
    %v246 = vshrl.u32 %v245, 7
    %v247 = vsub.s32 %v214, %v246
    %v248 = vrot.slane %v241, %v247
    %v249 = vlaneseq
    %v250 = vshrl.u32 %v249, 7
    %v251 = vsub.s32 %v214, %v250
    %v252 = vrot.slane %v242, %v251
    %v253 = vsel %vm223, %v252, %v248
    %vm255 = vcmask 25600
    %256 = vst.msk [vmem:[#allocation5] sm:$0x3] %vm255, %v253
    %vm257 = vcmp.eq.f32.partialorder %v232, %v237
    %vm258 = vcmp.eq.f32.partialorder %v233, %v240
    %v259 = vsel %vm257, %v214, 4
    %v260 = vsel %vm258, %v214, 4
    %v261 = vsel %vm234, %v259, 2147483647
    %v262 = vand.u32 %v261, 65535
    %v263 = vshra.s32 %v261, 16
    %v264 = vcvt.s32.f32 %v262
    %v265 = vcvt.s32.f32 %v263
    %266 = vmin.xlane.f32.xlu0 %v265
    %v267 = vpop.xlane.xlu0 %266
    %vm268 = vcmp.eq.f32.partialorder %v265, %v267
    %v269 = vsel %vm268, %v264, inf
    %270 = vmin.xlane.f32.xlu0 %v269
    %v271 = vpop.xlane.xlu0 %270
    %v272 = vcvt.f32.s32 %v271
    %v273 = vcvt.f32.s32 %v267
    %v274 = vshll.u32 %v273, 16
    %v275 = vadd.s32 %v274, %v272
    %v276 = vsel %vm234, %v260, 2147483647
    %v277 = vand.u32 %v276, 65535
    %v278 = vshra.s32 %v276, 16
    %v279 = vcvt.s32.f32 %v277
    %v280 = vcvt.s32.f32 %v278
    %281 = vmin.xlane.f32.xlu0 %v280
    %v282 = vpop.xlane.xlu0 %281
    %vm283 = vcmp.eq.f32.partialorder %v280, %v282
    %v284 = vsel %vm283, %v279, inf
    %285 = vmin.xlane.f32.xlu0 %v284
    %v286 = vpop.xlane.xlu0 %285
    %v287 = vcvt.f32.s32 %v286
    %v288 = vcvt.f32.s32 %v282
    %v289 = vshll.u32 %v288, 16
    %v290 = vadd.s32 %v289, %v287
    %v291 = vlaneseq
    %v292 = vshrl.u32 %v291, 7
    %v293 = vsub.s32 %v214, %v292
    %v294 = vrot.slane %v275, %v293
    %v295 = vlaneseq
    %v296 = vshrl.u32 %v295, 7
    %v297 = vsub.s32 %v214, %v296
    %v298 = vrot.slane %v290, %v297
    %v299 = vsel %vm223, %v298, %v294
    %300 = vst.msk [vmem:[#allocation6] sm:$0x3] %vm255, %v299
    // Predicated region
    $region10: #{tpu_custom_call.1} parent=1 // pred_check
      _
    $region11: #{tpu_custom_call.1} parent=1 // pred_check_branch
      %302 = sbr.rel (0) target = $region13
    $region12: #{tpu_custom_call.1} parent=1 // pred_region
      %s304 = ssub.s32 32, 32
      %305 = vsyncadd [#allocation4], %s304
      %s307 = sshll.u32 [#allocation5], 4
      %s308 = int_to_ptr.vmem [resolvable:$true] %s307
      %310 = dma.vmem_to_hbm [thread:$0]  %s308, 32, %s1, [#allocation4]
    $region13: #{tpu_custom_call.1} parent=1 // pred_fallthru
      _
    // Predicated region
    $region14: #{tpu_custom_call.1} parent=1 // pred_check
      _
    $region15: #{tpu_custom_call.1} parent=1 // pred_check_branch
      %312 = sbr.rel (0) target = $region17
    $region16: #{tpu_custom_call.1} parent=1 // pred_region
      %s314 = ssub.s32 32, 32
      %315 = vsyncadd [#allocation7], %s314
      %s317 = sshll.u32 [#allocation6], 4
      %s318 = int_to_ptr.vmem [resolvable:$true] %s317
      %320 = dma.vmem_to_hbm [thread:$0]  %s318, 32, %s2, [#allocation7]
    $region17: #{tpu_custom_call.1} parent=1 // pred_fallthru
      _
    // Predicated region
    $region18: #{tpu_custom_call.1} parent=1 // pred_check
      _
    $region19: #{tpu_custom_call.1} parent=1 // pred_check_branch
      %322 = sbr.rel (0) target = $region21
    $region20: #{tpu_custom_call.1} parent=1 // pred_region
      %323 = dma.done [#allocation4], 32
    $region21: #{tpu_custom_call.1} parent=1 // pred_fallthru
      _
    // Predicated region
    $region22: #{tpu_custom_call.1} parent=1 // pred_check
      _
    $region23: #{tpu_custom_call.1} parent=1 // pred_check_branch
      %325 = sbr.rel (0) target = $region25
    $region24: #{tpu_custom_call.1} parent=1 // pred_region
      %326 = dma.done [#allocation7], 32
    $region25: #{tpu_custom_call.1} parent=1 // pred_fallthru
      _
    %327 = vsyncpa [#allocation3], 1
    %328 = vsyncpa [#allocation4], 1
    %329 = vsyncpa [#allocation7], 1

</llo_original>
